<compile_context>
chip_gen: v7x
topology: tpu7x:2x2x1
jax: 0.10.0
libtpu: 0.0.40
codegen_flags: <defaults>
</compile_context>

<pallas_src>
import functools

import jax
import jax.numpy as jnp
from jax.experimental import pallas as pl
from jax.experimental.pallas import tpu as pltpu


def _round_up(x: int, m: int) -> int:
    return (x + m - 1) // m * m


def _ffn_kernel(x_ref, w1t_ref, b1_ref, w2t_ref, b2_ref, o_ref):
    # x_ref: (tm, Dp); w1t/w2t: (Dp, Dp) bf16 (resident); b1/b2: (1, Dp) f32.
    mx_dtype = w1t_ref.dtype
    x = x_ref[...].astype(mx_dtype)                       # bf16 MXU operands
    # conv1 (1x1) == x @ W1^T + b1, f32 accumulation on the MXU
    h = jnp.dot(x, w1t_ref[...], preferred_element_type=jnp.float32)
    h = jnp.maximum(h + b1_ref[...], 0.0)                 # bias + ReLU (f32 VPU)
    # conv2 (1x1) == h @ W2^T + b2  (dropout == identity at inference)
    y = jnp.dot(h.astype(mx_dtype), w2t_ref[...],
                preferred_element_type=jnp.float32)
    y = y + b2_ref[...]
    o_ref[...] = y.astype(o_ref.dtype)


@functools.partial(jax.jit, static_argnames=("tm",))
def point_wise_ffn(inputs, w1, b1, w2, b2, *, tm=512):
    """inputs: (B, L, D); w1, w2: (D, D, 1) PyTorch Conv1d weights; b1, b2: (D,)."""
    B, L, D = inputs.shape
    n_rows = B * L

    # --- wrapper glue (plain JAX): flatten tokens, pad, pre-transform weights.
    Dp = _round_up(D, 128)                 # lane-dense channels (multiple of 128)
    pad_c = Dp - D

    # Row tile: multiple of 8, at most `tm`, and capped so grid[0] >= 2 when
    # possible (feeds both v7x TensorCores on the "parallel" axis).
    tm = max(8, tm - tm % 8)
    rows8 = _round_up(n_rows, 8)
    half = _round_up(-(-rows8 // 2), 8)
    tm_eff = max(8, min(tm, half))
    rows_padded = _round_up(n_rows, tm_eff)
    grid = (rows_padded // tm_eff,)

    x2d = inputs.reshape(n_rows, D)
    pad_r = rows_padded - n_rows
    if pad_r or pad_c:
        x2d = jnp.pad(x2d, ((0, pad_r), (0, pad_c)))

    def _prep_weight(w):
        wt = jnp.transpose(w[:, :, 0])                    # (D_in, D_out): y = x @ wt
        if pad_c:
            wt = jnp.pad(wt, ((0, pad_c), (0, pad_c)))
        return wt.astype(jnp.bfloat16)                    # bf16 MXU operand

    def _prep_bias(b):
        if pad_c:
            b = jnp.pad(b, (0, pad_c))
        return b.reshape(1, Dp).astype(jnp.float32)

    w1t, w2t = _prep_weight(w1), _prep_weight(w2)
    b1r, b2r = _prep_bias(b1), _prep_bias(b2)

    # VMEM budget: resident bf16 weights (x2 pipeline buffers) + streamed x/out tiles.
    itemsize = jnp.dtype(inputs.dtype).itemsize
    w_bytes = 2 * Dp * Dp * 2 * 2
    io_bytes = 2 * tm_eff * Dp * (itemsize + itemsize)
    vmem_limit = int(min(max(2 * (w_bytes + io_bytes) + (4 << 20), 16 << 20), 64 << 20))

    cost = pl.CostEstimate(
        flops=4 * rows_padded * Dp * Dp,                  # two matmuls, 2 flop/MAC
        transcendentals=0,
        bytes_accessed=rows_padded * Dp * 2 * itemsize + 2 * Dp * Dp * 2 + 2 * Dp * 4,
    )

    out2d = pl.pallas_call(
        _ffn_kernel,
        out_shape=jax.ShapeDtypeStruct((rows_padded, Dp), inputs.dtype),
        grid_spec=pltpu.PrefetchScalarGridSpec(
            num_scalar_prefetch=0,
            grid=grid,
            in_specs=[
                pl.BlockSpec((tm_eff, Dp), lambda i: (i, 0)),   # x rows (streamed)
                pl.BlockSpec((Dp, Dp), lambda i: (0, 0)),       # W1^T (resident)
                pl.BlockSpec((1, Dp), lambda i: (0, 0)),        # b1
                pl.BlockSpec((Dp, Dp), lambda i: (0, 0)),       # W2^T (resident)
                pl.BlockSpec((1, Dp), lambda i: (0, 0)),        # b2
            ],
            out_specs=pl.BlockSpec((tm_eff, Dp), lambda i: (i, 0)),
        ),
        compiler_params=pltpu.CompilerParams(
            dimension_semantics=("parallel",),
            vmem_limit_bytes=vmem_limit,
        ),
        cost_estimate=cost,
    )(x2d, w1t, b1r, w2t, b2r)

    return out2d[:n_rows, :D].reshape(B, L, D)


def _init_conv1d_params(key, d):
    """Deterministic Conv1d(d, d, kernel_size=1) init (PyTorch-style uniform bound)."""
    kw, kb = jax.random.split(key)
    bound = 1.0 / jnp.sqrt(jnp.float32(d))   # fan_in = d * kernel_size(=1)
    w = jax.random.uniform(kw, (d, d, 1), jnp.float32, -bound, bound)
    b = jax.random.uniform(kb, (d,), jnp.float32, -bound, bound)
    return w, b


def _reference(inputs, w1, b1, w2, b2):
    """Pure-JAX f32 reference of the PyTorch forward (eval mode)."""
    x = jnp.transpose(inputs, (0, 2, 1))                      # (B, D, L)
    h = jnp.einsum("oi,bil->bol", w1[:, :, 0], x) + b1[None, :, None]
    h = jnp.maximum(h, 0.0)
    y = jnp.einsum("oi,bil->bol", w2[:, :, 0], h) + b2[None, :, None]
    return jnp.transpose(y, (0, 2, 1))                        # (B, L, D)


if __name__ == "__main__":
    key = jax.random.PRNGKey(0)
    k_in, k_c1, k_c2 = jax.random.split(key, 3)

    B, L, D = 2, 8, 32          # batch, sequence length, embedding_dims
    inputs = jax.random.normal(k_in, (B, L, D), jnp.float32)

    w1, b1 = _init_conv1d_params(k_c1, D)
    w2, b2 = _init_conv1d_params(k_c2, D)

    out = point_wise_ffn(inputs, w1, b1, w2, b2)
    out = jax.block_until_ready(out)

    ref = _reference(inputs, w1, b1, w2, b2)
    assert out.shape == (B, L, D), out.shape
    # bf16 MXU operands with f32 accumulation -> compare with bf16-level tolerance.
    max_err = float(jnp.max(jnp.abs(out - ref)))
    assert jnp.allclose(out, ref, atol=2e-2, rtol=2e-2), max_err

    print("KERNEL_OK")
</pallas_src>

<mosaic_0001>
module attributes {stable_mosaic.version = 11 : i64} {
  func.func @_ffn_kernel(%arg0: i32, %arg1: memref<8x128xf32, #tpu.memory_space<vmem>>, %arg2: memref<128x128xbf16, #tpu.memory_space<vmem>>, %arg3: memref<1x128xf32, #tpu.memory_space<vmem>>, %arg4: memref<128x128xbf16, #tpu.memory_space<vmem>>, %arg5: memref<1x128xf32, #tpu.memory_space<vmem>>, %arg6: memref<8x128xf32, #tpu.memory_space<vmem>>) attributes {dimension_semantics = [#tpu.dimension_semantics<parallel>], iteration_bounds = array<i64: 2>, scalar_prefetch = 0 : i64, scratch_operands = 0 : i64, tpu.core_type = #tpu.core_type<tc>, window_params = [{transform_indices = @transform_0, window_bounds = array<i64: 8, 128>}, {pipeline_mode = #tpu.pipeline_mode<synchronous>, transform_indices = @transform_1, window_bounds = array<i64: 128, 128>}, {pipeline_mode = #tpu.pipeline_mode<synchronous>, transform_indices = @transform_2, window_bounds = array<i64: 1, 128>}, {pipeline_mode = #tpu.pipeline_mode<synchronous>, transform_indices = @transform_3, window_bounds = array<i64: 128, 128>}, {pipeline_mode = #tpu.pipeline_mode<synchronous>, transform_indices = @transform_4, window_bounds = array<i64: 1, 128>}, {transform_indices = @transform_5, window_bounds = array<i64: 8, 128>}]} {
    %c0 = arith.constant 0 : index
    %c0_0 = arith.constant 0 : index
    %0 = vector.load %arg1[%c0, %c0_0] : memref<8x128xf32, #tpu.memory_space<vmem>>, vector<8x128xf32>
    %1 = arith.truncf %0 : vector<8x128xf32> to vector<8x128xbf16>
    %c0_1 = arith.constant 0 : index
    %c0_2 = arith.constant 0 : index
    %2 = vector.load %arg2[%c0_1, %c0_2] : memref<128x128xbf16, #tpu.memory_space<vmem>>, vector<128x128xbf16>
    %cst = arith.constant dense<0.000000e+00> : vector<8x128xf32>
    %3 = tpu.matmul %1, %2, %cst {dimension_numbers = #tpu.dot_dimension_numbers<[1], [0], [0], [1], [0, 0, 1, 1], [], []>} : vector<8x128xbf16>, vector<128x128xbf16>, vector<8x128xf32> -> vector<8x128xf32>
    %c0_3 = arith.constant 0 : index
    %c0_4 = arith.constant 0 : index
    %4 = vector.load %arg3[%c0_3, %c0_4] : memref<1x128xf32, #tpu.memory_space<vmem>>, vector<1x128xf32>
    %5 = vector.broadcast %4 : vector<1x128xf32> to vector<8x128xf32>
    %6 = arith.addf %3, %5 : vector<8x128xf32>
    %cst_5 = arith.constant 0.000000e+00 : f32
    %7 = vector.broadcast %cst_5 : f32 to vector<8x128xf32>
    %8 = arith.maximumf %6, %7 : vector<8x128xf32>
    %9 = arith.truncf %8 : vector<8x128xf32> to vector<8x128xbf16>
    %c0_6 = arith.constant 0 : index
    %c0_7 = arith.constant 0 : index
    %10 = vector.load %arg4[%c0_6, %c0_7] : memref<128x128xbf16, #tpu.memory_space<vmem>>, vector<128x128xbf16>
    %cst_8 = arith.constant dense<0.000000e+00> : vector<8x128xf32>
    %11 = tpu.matmul %9, %10, %cst_8 {dimension_numbers = #tpu.dot_dimension_numbers<[1], [0], [0], [1], [0, 0, 1, 1], [], []>} : vector<8x128xbf16>, vector<128x128xbf16>, vector<8x128xf32> -> vector<8x128xf32>
    %c0_9 = arith.constant 0 : index
    %c0_10 = arith.constant 0 : index
    %12 = vector.load %arg5[%c0_9, %c0_10] : memref<1x128xf32, #tpu.memory_space<vmem>>, vector<1x128xf32>
    %13 = vector.broadcast %12 : vector<1x128xf32> to vector<8x128xf32>
    %14 = arith.addf %11, %13 : vector<8x128xf32>
    %c0_11 = arith.constant 0 : index
    %c0_12 = arith.constant 0 : index
    %15 = vector.load %arg6[%c0_11, %c0_12] : memref<8x128xf32, #tpu.memory_space<vmem>>, vector<8x128xf32>
    tpu.vector_store %arg6[%c0_11, %c0_12], %14 {strides = array<i32>} : memref<8x128xf32, #tpu.memory_space<vmem>>, vector<8x128xf32>,
    return
  }
  func.func @transform_0(%arg0: i32) -> (i32, i32) {
    %c0_i32 = arith.constant 0 : i32
    %c0_i32_0 = arith.constant 0 : i32
    return %arg0, %c0_i32 : i32, i32
  }
  func.func @transform_1(%arg0: i32) -> (i32, i32) {
    %c0_i32 = arith.constant 0 : i32
    %c0_i32_0 = arith.constant 0 : i32
    %c0_i32_1 = arith.constant 0 : i32
    return %c0_i32, %c0_i32_0 : i32, i32
  }
  func.func @transform_2(%arg0: i32) -> (i32, i32) {
    %c0_i32 = arith.constant 0 : i32
    %c0_i32_0 = arith.constant 0 : i32
    %c0_i32_1 = arith.constant 0 : i32
    return %c0_i32, %c0_i32_0 : i32, i32
  }
  func.func @transform_3(%arg0: i32) -> (i32, i32) {
    %c0_i32 = arith.constant 0 : i32
    %c0_i32_0 = arith.constant 0 : i32
    %c0_i32_1 = arith.constant 0 : i32
    return %c0_i32, %c0_i32_0 : i32, i32
  }
  func.func @transform_4(%arg0: i32) -> (i32, i32) {
    %c0_i32 = arith.constant 0 : i32
    %c0_i32_0 = arith.constant 0 : i32
    %c0_i32_1 = arith.constant 0 : i32
    return %c0_i32, %c0_i32_0 : i32, i32
  }
  func.func @transform_5(%arg0: i32) -> (i32, i32) {
    %c0_i32 = arith.constant 0 : i32
    %c0_i32_0 = arith.constant 0 : i32
    return %arg0, %c0_i32 : i32, i32
  }
}

</mosaic_0001>

<llo_original>
// kernel: point_wise_ffn.1
$region0: #{point_wise_ffn.1}
  #allocation0 [shape = 'u32[]', space=smem, size = 0x4, offset = 0x4, fixed_abs, tag = 'smem constant byte address 0x4 - core index']
  #allocation1 [shape = 'u32[144,128]{1,0:T(1,128)}', space=vmem, size = 0x12000, scoped, tag = 'internal scratch']
  %s0 = inlined_call_operand.vmem [shape: f32[16,128], index: 0, kind: input, shape index: {}]
  %s1 = inlined_call_operand.vmem [shape: bf16[128,128], index: 1, kind: input, shape index: {}]
  %s2 = inlined_call_operand.vmem [shape: f32[1,128], index: 2, kind: input, shape index: {}]
  %s3 = inlined_call_operand.vmem [shape: bf16[128,128], index: 3, kind: input, shape index: {}]
  %s4 = inlined_call_operand.vmem [shape: f32[1,128], index: 4, kind: input, shape index: {}]
  %s5 = inlined_call_operand.vmem [shape: f32[16,128], index: 5, kind: output, shape index: {}]
  %s6 = sld [smem:[#allocation0]]
  $region53: #{point_wise_ffn.1} parent=0
    _
  %s8 = ssub.s32 1, %s6
  %s9 = scalar_select 0, %s8, %s6
  loop: start=0, step=1, limit=4
  $region2: #{point_wise_ffn.1} parent=0 // loop_pre_header
    _
  $region3: #{point_wise_ffn.1} parent=0 // loop_header
    %s11 = sphi 0, %s15
    %p12 = scmp.ge.s32.totalorder %s11, 4
    %s21 = sphi 0, %s23
    %s24 = sphi 0, %s21
    %s25 = sphi 0, %s24
    %s41 = sphi 0, %s25
    %s45 = sphi 0, %s45
    %s47 = sphi 0, %s45
    %s48 = sphi 0, %s47
    %s62 = sphi 0, %s48
    %s66 = sphi 0, %s66
    %s68 = sphi 0, %s66
    %s69 = sphi 0, %s68
    %s83 = sphi 0, %s69
    %s87 = sphi 0, %s87
    %s89 = sphi 0, %s87
    %s90 = sphi 0, %s89
    %s104 = sphi 0, %s90
    %s108 = sphi 0, %s108
    %s110 = sphi 0, %s108
    %s111 = sphi 0, %s110
    %s125 = sphi 0, %s111
    %s131 = sphi 0, %s133
    %s134 = sphi 0, %s131
    %s135 = sphi 0, %s134
    %s151 = sphi 0, %s135
  $region4: #{point_wise_ffn.1} parent=0 // loop_header_branch
    %14 = sbr.rel (%p12) target = $region8
  $region5: #{point_wise_ffn.1} parent=0 // loop_body
    %s16 = ssub.s32 %s11, 1
    %s17 = ssub.s32 %s11, 2
    %s18 = sadd.s32 %s11, 1
    %s19 = ssub.s32 %s11, %s18
    %p20 = scmp.eq.s32.totalorder %s19, 0
    %s22 = sadd.s32 %s21, 1
    %s23 = scalar_select %p20, %s21, %s22
    %p26 = pneg %p20
    %p27 = scmp.eq.s32.totalorder %s11, 1
    %p28 = por %p26, %p27
    %p29 = scmp.ne.s32.totalorder %s21, %s24
    %p30 = scmp.eq.s32.totalorder %s11, 0
    %p31 = por %p29, %p30
    %p32 = scmp.ne.s32.totalorder %s21, %s24
    %p33 = scmp.eq.s32.totalorder %s16, 1
    %p34 = por %p32, %p33
    %p35 = scmp.ne.s32.totalorder %s24, %s25
    %p36 = scmp.eq.s32.totalorder %s16, 0
    %p37 = por %p35, %p36
    %p38 = scmp.ne.s32.totalorder %s24, %s25
    %p39 = scmp.eq.s32.totalorder %s17, 1
    %p40 = por %p38, %p39
    %p42 = scmp.ne.s32.totalorder %s25, %s41
    %p43 = scmp.eq.s32.totalorder %s17, 0
    %p44 = por %p42, %p43
    %s46 = sadd.s32 %s45, 1
    %p49 = scmp.eq.s32.totalorder %s11, 1
    %p50 = scmp.ne.s32.totalorder %s45, %s47
    %p51 = scmp.eq.s32.totalorder %s11, 0
    %p52 = por %p50, %p51
    %p53 = scmp.ne.s32.totalorder %s45, %s47
    %p54 = scmp.eq.s32.totalorder %s16, 1
    %p55 = por %p53, %p54
    %p56 = scmp.ne.s32.totalorder %s47, %s48
    %p57 = scmp.eq.s32.totalorder %s16, 0
    %p58 = por %p56, %p57
    %p59 = scmp.ne.s32.totalorder %s47, %s48
    %p60 = scmp.eq.s32.totalorder %s17, 1
    %p61 = por %p59, %p60
    %p63 = scmp.ne.s32.totalorder %s48, %s62
    %p64 = scmp.eq.s32.totalorder %s17, 0
    %p65 = por %p63, %p64
    %s67 = sadd.s32 %s66, 1
    %p70 = scmp.eq.s32.totalorder %s11, 1
    %p71 = scmp.ne.s32.totalorder %s66, %s68
    %p72 = scmp.eq.s32.totalorder %s11, 0
    %p73 = por %p71, %p72
    %p74 = scmp.ne.s32.totalorder %s66, %s68
    %p75 = scmp.eq.s32.totalorder %s16, 1
    %p76 = por %p74, %p75
    %p77 = scmp.ne.s32.totalorder %s68, %s69
    %p78 = scmp.eq.s32.totalorder %s16, 0
    %p79 = por %p77, %p78
    %p80 = scmp.ne.s32.totalorder %s68, %s69
    %p81 = scmp.eq.s32.totalorder %s17, 1
    %p82 = por %p80, %p81
    %p84 = scmp.ne.s32.totalorder %s69, %s83
    %p85 = scmp.eq.s32.totalorder %s17, 0
    %p86 = por %p84, %p85
    %s88 = sadd.s32 %s87, 1
    %p91 = scmp.eq.s32.totalorder %s11, 1
    %p92 = scmp.ne.s32.totalorder %s87, %s89
    %p93 = scmp.eq.s32.totalorder %s11, 0
    %p94 = por %p92, %p93
    %p95 = scmp.ne.s32.totalorder %s87, %s89
    %p96 = scmp.eq.s32.totalorder %s16, 1
    %p97 = por %p95, %p96
    %p98 = scmp.ne.s32.totalorder %s89, %s90
    %p99 = scmp.eq.s32.totalorder %s16, 0
    %p100 = por %p98, %p99
    %p101 = scmp.ne.s32.totalorder %s89, %s90
    %p102 = scmp.eq.s32.totalorder %s17, 1
    %p103 = por %p101, %p102
    %p105 = scmp.ne.s32.totalorder %s90, %s104
    %p106 = scmp.eq.s32.totalorder %s17, 0
    %p107 = por %p105, %p106
    %s109 = sadd.s32 %s108, 1
    %p112 = scmp.eq.s32.totalorder %s11, 1
    %p113 = scmp.ne.s32.totalorder %s108, %s110
    %p114 = scmp.eq.s32.totalorder %s11, 0
    %p115 = por %p113, %p114
    %p116 = scmp.ne.s32.totalorder %s108, %s110
    %p117 = scmp.eq.s32.totalorder %s16, 1
    %p118 = por %p116, %p117
    %p119 = scmp.ne.s32.totalorder %s110, %s111
    %p120 = scmp.eq.s32.totalorder %s16, 0
    %p121 = por %p119, %p120
    %p122 = scmp.ne.s32.totalorder %s110, %s111
    %p123 = scmp.eq.s32.totalorder %s17, 1
    %p124 = por %p122, %p123
    %p126 = scmp.ne.s32.totalorder %s111, %s125
    %p127 = scmp.eq.s32.totalorder %s17, 0
    %p128 = por %p126, %p127
    %s129 = ssub.s32 %s11, %s18
    %p130 = scmp.eq.s32.totalorder %s129, 0
    %s132 = sadd.s32 %s131, 1
    %s133 = scalar_select %p130, %s131, %s132
    %p136 = pneg %p130
    %p137 = scmp.eq.s32.totalorder %s11, 1
    %p138 = por %p136, %p137
    %p139 = scmp.ne.s32.totalorder %s131, %s134
    %p140 = scmp.eq.s32.totalorder %s11, 0
    %p141 = por %p139, %p140
    %p142 = scmp.ne.s32.totalorder %s131, %s134
    %p143 = scmp.eq.s32.totalorder %s16, 1
    %p144 = por %p142, %p143
    %p145 = scmp.ne.s32.totalorder %s134, %s135
    %p146 = scmp.eq.s32.totalorder %s16, 0
    %p147 = por %p145, %p146
    %p148 = scmp.ne.s32.totalorder %s134, %s135
    %p149 = scmp.eq.s32.totalorder %s17, 1
    %p150 = por %p148, %p149
    %p152 = scmp.ne.s32.totalorder %s135, %s151
    %p153 = scmp.eq.s32.totalorder %s17, 0
    %p154 = por %p152, %p153
    %p155 = scmp.le.s32.totalorder 1, %s11
    %p156 = scmp.lt.s32.totalorder %s11, 3
    %p157 = pnand %p155, %p156
    %p158 = pneg %p157
    // Predicated region
    $region9: #{point_wise_ffn.1} parent=5 // pred_check
      _
    $region10: #{point_wise_ffn.1} parent=5 // pred_check_branch
      %160 = sbr.rel (%p157) target = $region12
    $region11: #{point_wise_ffn.1} parent=5 // pred_region
      %s161 = ssub.s32 %s11, 1
      // Predicated region
      $region13: #{point_wise_ffn.1} parent=11 // pred_check
        %p162 = pneg %p58
      $region14: #{point_wise_ffn.1} parent=11 // pred_check_branch
        %164 = sbr.rel (%p162) target = $region16
      $region15: #{point_wise_ffn.1} parent=11 // pred_region
        _
      $region16: #{point_wise_ffn.1} parent=11 // pred_fallthru
        _
      // Predicated region
      $region17: #{point_wise_ffn.1} parent=11 // pred_check
        %p165 = pneg %p79
      $region18: #{point_wise_ffn.1} parent=11 // pred_check_branch
        %167 = sbr.rel (%p165) target = $region20
      $region19: #{point_wise_ffn.1} parent=11 // pred_region
        _
      $region20: #{point_wise_ffn.1} parent=11 // pred_fallthru
        _
      // Predicated region
      $region21: #{point_wise_ffn.1} parent=11 // pred_check
        %p168 = pneg %p100
      $region22: #{point_wise_ffn.1} parent=11 // pred_check_branch
        %170 = sbr.rel (%p168) target = $region24
      $region23: #{point_wise_ffn.1} parent=11 // pred_region
        _
      $region24: #{point_wise_ffn.1} parent=11 // pred_fallthru
        _
      // Predicated region
      $region25: #{point_wise_ffn.1} parent=11 // pred_check
        %p171 = pneg %p121
      $region26: #{point_wise_ffn.1} parent=11 // pred_check_branch
        %173 = sbr.rel (%p171) target = $region28
      $region27: #{point_wise_ffn.1} parent=11 // pred_region
        _
      $region28: #{point_wise_ffn.1} parent=11 // pred_fallthru
        _
    $region12: #{point_wise_ffn.1} parent=5 // pred_fallthru
      _
    %p174 = scmp.lt.s32.totalorder %s11, 2
    // Predicated region
    $region29: #{point_wise_ffn.1} parent=5 // pred_check
      %p175 = pneg %p174
    $region30: #{point_wise_ffn.1} parent=5 // pred_check_branch
      %177 = sbr.rel (%p175) target = $region32
    $region31: #{point_wise_ffn.1} parent=5 // pred_region
      // Predicated region
      $region33: #{point_wise_ffn.1} parent=31 // pred_check
        %p178 = pneg %p31
      $region34: #{point_wise_ffn.1} parent=31 // pred_check_branch
        %180 = sbr.rel (%p178) target = $region36
      $region35: #{point_wise_ffn.1} parent=31 // pred_region
        %p181 = scmp.lt.s32.totalorder %s11, 1
        %s182 = scalar_select %p181, %s11, 1
        %s183 = smul.addr %s182, 8
        %s184 = scalar_lea.vmem %s0, %s183
      $region36: #{point_wise_ffn.1} parent=31 // pred_fallthru
        _
    $region32: #{point_wise_ffn.1} parent=5 // pred_fallthru
      _
    %p185 = scmp.le.s32.totalorder 1, %s11
    %p186 = scmp.lt.s32.totalorder %s11, 3
    %p187 = pnand %p185, %p186
    %p188 = pneg %p187
    // Predicated region
    $region37: #{point_wise_ffn.1} parent=5 // pred_check
      _
    $region38: #{point_wise_ffn.1} parent=5 // pred_check_branch
      %190 = sbr.rel (%p187) target = $region40
    $region39: #{point_wise_ffn.1} parent=5 // pred_region
      %s191 = ssub.s32 %s11, 1
      %p192 = scmp.lt.s32.totalorder %s16, 1
      %s193 = scalar_select %p192, %s16, 1
      %s194 = smul.addr %s193, 8
      %s195 = scalar_lea.vmem %s0, %s194
      %p196 = pneg %p37
      %p197 = pneg %p34
      %p198 = pneg %p58
      %p199 = pneg %p55
      %p200 = pneg %p79
      %p201 = pneg %p76
      %p202 = pneg %p100
      %p203 = pneg %p97
      %p204 = pneg %p121
      %p205 = pneg %p118
      %p206 = pneg %p147
      %p207 = pneg %p144
      %p208 = scmp.lt.s32.totalorder %s16, 1
      %s209 = scalar_select %p208, %s16, 1
      %s210 = smul.addr %s209, 8
      %s211 = scalar_lea.vmem %s5, %s210
      %p212 = scmp.lt.s32.totalorder %s16, 1
      %s213 = scalar_select %p212, %s16, 1
      %s214 = smul.addr %s213, 8
      %s215 = scalar_lea.vmem %s0, %s214
      %p216 = scmp.lt.s32.totalorder %s16, 1
      %s217 = scalar_select %p216, %s16, 1
      %s218 = smul.addr %s217, 8
      %s219 = scalar_lea.vmem %s5, %s218
      %v221 = vld [vmem:[%s215] sm:$0xff]
      %v222 = vpack.c.bf16 %v221, %v221
      %v223 = vld [vmem:[%s1] sm:$0xf]
      %v224 = vld [vmem:[%s1 + $0x4] sm:$0xf]
      %v225 = vld [vmem:[%s1 + $0x8] sm:$0xf]
      %v226 = vld [vmem:[%s1 + $0xc] sm:$0xf]
      %v227 = vld [vmem:[%s1 + $0x10] sm:$0xf]
      %v228 = vld [vmem:[%s1 + $0x14] sm:$0xf]
      %v229 = vld [vmem:[%s1 + $0x18] sm:$0xf]
      %v230 = vld [vmem:[%s1 + $0x1c] sm:$0xf]
      %v231 = vld [vmem:[%s1 + $0x20] sm:$0xf]
      %v232 = vld [vmem:[%s1 + $0x24] sm:$0xf]
      %v233 = vld [vmem:[%s1 + $0x28] sm:$0xf]
      %v234 = vld [vmem:[%s1 + $0x2c] sm:$0xf]
      %v235 = vld [vmem:[%s1 + $0x30] sm:$0xf]
      %v236 = vld [vmem:[%s1 + $0x34] sm:$0xf]
      %v237 = vld [vmem:[%s1 + $0x38] sm:$0xf]
      %v238 = vld [vmem:[%s1 + $0x3c] sm:$0xf]
      %v239 = vld [vmem:[%s2] sm:$0x1]
      %v241 = vlaneseq
      %v242 = vshrl.u32 %v241, 7
      %v243 = vsub.s32 0, %v242
      %v244 = vrot.slane %v239, %v243
      %v262 = vunpack.c.l.b16 %v223
      %v263 = vunpack.c.l.b16 %v224
      %v264 = vunpack.c.l.b16 %v225
      %v265 = vunpack.c.l.b16 %v226
      %v266 = vunpack.c.l.b16 %v227
      %v267 = vunpack.c.l.b16 %v228
      %v268 = vunpack.c.l.b16 %v229
      %v269 = vunpack.c.l.b16 %v230
      %v270 = vunpack.c.l.b16 %v231
      %v271 = vunpack.c.l.b16 %v232
      %v272 = vunpack.c.l.b16 %v233
      %v273 = vunpack.c.l.b16 %v234
      %v274 = vunpack.c.l.b16 %v235
      %v275 = vunpack.c.l.b16 %v236
      %v276 = vunpack.c.l.b16 %v237
      %v277 = vunpack.c.l.b16 %v238
      %v278 = vpack.c.b16 %v263, %v262
      %v279 = vpack.c.b16 %v265, %v264
      %v280 = vpack.c.b16 %v267, %v266
      %v281 = vpack.c.b16 %v269, %v268
      %v282 = vpack.c.b16 %v271, %v270
      %v283 = vpack.c.b16 %v273, %v272
      %v284 = vpack.c.b16 %v275, %v274
      %v285 = vpack.c.b16 %v277, %v276
      %294 = vmatprep.subr.bf16.mxu0 0
      %295 = vmatpush1.bf16.msra.mxu0 %v278
      %296 = vmatprep.subr.bf16.mxu0 0
      %297 = vmatpush1.bf16.msra.mxu0 %v279
      %298 = vmatprep.subr.bf16.mxu0 0
      %299 = vmatpush1.bf16.msra.mxu0 %v280
      %300 = vmatprep.subr.bf16.mxu0 0
      %301 = vmatpush1.bf16.msra.mxu0 %v281
      %302 = vmatprep.subr.bf16.mxu0 0
      %303 = vmatpush1.bf16.msra.mxu0 %v282
      %304 = vmatprep.subr.bf16.mxu0 0
      %305 = vmatpush1.bf16.msra.mxu0 %v283
      %306 = vmatprep.subr.bf16.mxu0 0
      %307 = vmatpush1.bf16.msra.mxu0 %v284
      %308 = vmatprep.subr.bf16.mxu0 0
      %309 = vmatpush1.bf16.msra.mxu0 %v285
      %310 = vmatprep.subr.bf16.mxu0 0
      %311 = vmatpush1.bf16.msra.mxu0 0
      %312 = vmatprep.subr.bf16.mxu0 0
      %313 = vmatpush1.bf16.msra.mxu0 0
      %314 = vmatprep.subr.bf16.mxu0 0
      %315 = vmatpush1.bf16.msra.mxu0 0
      %316 = vmatprep.subr.bf16.mxu0 0
      %317 = vmatpush1.bf16.msra.mxu0 0
      %318 = vmatprep.subr.bf16.mxu0 0
      %319 = vmatpush1.bf16.msra.mxu0 0
      %320 = vmatprep.subr.bf16.mxu0 0
      %321 = vmatpush1.bf16.msra.mxu0 0
      %322 = vmatprep.subr.bf16.mxu0 0
      %323 = vmatpush1.bf16.msra.mxu0 0
      %324 = vmatprep.subr.bf16.mxu0 0
      %325 = vmatpush1.bf16.msra.mxu0 0
      %326 = vmatprep.mubr.bf16.mxu0 0
      %327 = vmatmul.mubr.bf16.gmra.mrb[0].mxu0 %v222
      %v328 = vpop.f32.mrb[0].mxu0
      %v329 = vadd.f32 %v244, %v328
      %v330 = vpop.f32.mrb[0].mxu0
      %v331 = vpop.f32.mrb[0].mxu0
      %v332 = vpop.f32.mrb[0].mxu0
      %333 = vdwg.mxu0
      %v334 = vmax.f32 %v329, 0.0
      %v335 = vpack.c.bf16 %v334, %v334
      %v336 = vld [vmem:[%s3] sm:$0xf]
      %v337 = vld [vmem:[%s3 + $0x4] sm:$0xf]
      %v338 = vld [vmem:[%s3 + $0x8] sm:$0xf]
      %v339 = vld [vmem:[%s3 + $0xc] sm:$0xf]
      %v340 = vld [vmem:[%s3 + $0x10] sm:$0xf]
      %v341 = vld [vmem:[%s3 + $0x14] sm:$0xf]
      %v342 = vld [vmem:[%s3 + $0x18] sm:$0xf]
      %v343 = vld [vmem:[%s3 + $0x1c] sm:$0xf]
      %v344 = vld [vmem:[%s3 + $0x20] sm:$0xf]
      %v345 = vld [vmem:[%s3 + $0x24] sm:$0xf]
      %v346 = vld [vmem:[%s3 + $0x28] sm:$0xf]
      %v347 = vld [vmem:[%s3 + $0x2c] sm:$0xf]
      %v348 = vld [vmem:[%s3 + $0x30] sm:$0xf]
      %v349 = vld [vmem:[%s3 + $0x34] sm:$0xf]
      %v350 = vld [vmem:[%s3 + $0x38] sm:$0xf]
      %v351 = vld [vmem:[%s3 + $0x3c] sm:$0xf]
      %v352 = vld [vmem:[%s4] sm:$0x1]
      %v354 = vlaneseq
      %v355 = vshrl.u32 %v354, 7
      %v356 = vsub.s32 0, %v355
      %v357 = vrot.slane %v352, %v356
      %v375 = vunpack.c.l.b16 %v336
      %v376 = vunpack.c.l.b16 %v337
      %v377 = vunpack.c.l.b16 %v338
      %v378 = vunpack.c.l.b16 %v339
      %v379 = vunpack.c.l.b16 %v340
      %v380 = vunpack.c.l.b16 %v341
      %v381 = vunpack.c.l.b16 %v342
      %v382 = vunpack.c.l.b16 %v343
      %v383 = vunpack.c.l.b16 %v344
      %v384 = vunpack.c.l.b16 %v345
      %v385 = vunpack.c.l.b16 %v346
      %v386 = vunpack.c.l.b16 %v347
      %v387 = vunpack.c.l.b16 %v348
      %v388 = vunpack.c.l.b16 %v349
      %v389 = vunpack.c.l.b16 %v350
      %v390 = vunpack.c.l.b16 %v351
      %v391 = vpack.c.b16 %v376, %v375
      %v392 = vpack.c.b16 %v378, %v377
      %v393 = vpack.c.b16 %v380, %v379
      %v394 = vpack.c.b16 %v382, %v381
      %v395 = vpack.c.b16 %v384, %v383
      %v396 = vpack.c.b16 %v386, %v385
      %v397 = vpack.c.b16 %v388, %v387
      %v398 = vpack.c.b16 %v390, %v389
      %407 = vmatprep.subr.bf16.mxu0 0
      %408 = vmatpush1.bf16.msra.mxu0 %v391
      %409 = vmatprep.subr.bf16.mxu0 0
      %410 = vmatpush1.bf16.msra.mxu0 %v392
      %411 = vmatprep.subr.bf16.mxu0 0
      %412 = vmatpush1.bf16.msra.mxu0 %v393
      %413 = vmatprep.subr.bf16.mxu0 0
      %414 = vmatpush1.bf16.msra.mxu0 %v394
      %415 = vmatprep.subr.bf16.mxu0 0
      %416 = vmatpush1.bf16.msra.mxu0 %v395
      %417 = vmatprep.subr.bf16.mxu0 0
      %418 = vmatpush1.bf16.msra.mxu0 %v396
      %419 = vmatprep.subr.bf16.mxu0 0
      %420 = vmatpush1.bf16.msra.mxu0 %v397
      %421 = vmatprep.subr.bf16.mxu0 0
      %422 = vmatpush1.bf16.msra.mxu0 %v398
      %423 = vmatprep.subr.bf16.mxu0 0
      %424 = vmatpush1.bf16.msra.mxu0 0
      %425 = vmatprep.subr.bf16.mxu0 0
      %426 = vmatpush1.bf16.msra.mxu0 0
      %427 = vmatprep.subr.bf16.mxu0 0
      %428 = vmatpush1.bf16.msra.mxu0 0
      %429 = vmatprep.subr.bf16.mxu0 0
      %430 = vmatpush1.bf16.msra.mxu0 0
      %431 = vmatprep.subr.bf16.mxu0 0
      %432 = vmatpush1.bf16.msra.mxu0 0
      %433 = vmatprep.subr.bf16.mxu0 0
      %434 = vmatpush1.bf16.msra.mxu0 0
      %435 = vmatprep.subr.bf16.mxu0 0
      %436 = vmatpush1.bf16.msra.mxu0 0
      %437 = vmatprep.subr.bf16.mxu0 0
      %438 = vmatpush1.bf16.msra.mxu0 0
      %439 = vmatprep.mubr.bf16.mxu0 0
      %440 = vmatmul.mubr.bf16.gmra.mrb[0].mxu0 %v335
      %v441 = vpop.f32.mrb[0].mxu0
      %v442 = vadd.f32 %v357, %v441
      %v443 = vpop.f32.mrb[0].mxu0
      %v444 = vpop.f32.mrb[0].mxu0
      %v445 = vpop.f32.mrb[0].mxu0
      %446 = vdwg.mxu0
      %447 = vst [vmem:[%s219] sm:$0xff] %v442
      %p448 = scmp.lt.s32.totalorder %s16, 1
      %s449 = scalar_select %p448, %s16, 1
      %s450 = smul.addr %s449, 8
      %s451 = scalar_lea.vmem %s5, %s450
      // Predicated region
      $region41: #{point_wise_ffn.1} parent=39 // pred_check
        %p452 = pneg %p144
      $region42: #{point_wise_ffn.1} parent=39 // pred_check_branch
        %454 = sbr.rel (%p452) target = $region44
      $region43: #{point_wise_ffn.1} parent=39 // pred_region
        _
      $region44: #{point_wise_ffn.1} parent=39 // pred_fallthru
        _
    $region40: #{point_wise_ffn.1} parent=5 // pred_fallthru
      _
    %p455 = scmp.le.s32.totalorder 2, %s11
    // Predicated region
    $region45: #{point_wise_ffn.1} parent=5 // pred_check
      %p456 = pneg %p455
    $region46: #{point_wise_ffn.1} parent=5 // pred_check_branch
      %458 = sbr.rel (%p456) target = $region48
    $region47: #{point_wise_ffn.1} parent=5 // pred_region
      %s459 = ssub.s32 %s11, 2
      // Predicated region
      $region49: #{point_wise_ffn.1} parent=47 // pred_check
        %p460 = pneg %p150
      $region50: #{point_wise_ffn.1} parent=47 // pred_check_branch
        %462 = sbr.rel (%p460) target = $region52
      $region51: #{point_wise_ffn.1} parent=47 // pred_region
        %p463 = scmp.lt.s32.totalorder %s17, 1
        %s464 = scalar_select %p463, %s17, 1
        %s465 = smul.addr %s464, 8
        %s466 = scalar_lea.vmem %s5, %s465
      $region52: #{point_wise_ffn.1} parent=47 // pred_fallthru
        _
    $region48: #{point_wise_ffn.1} parent=5 // pred_fallthru
      _
  $region6: #{point_wise_ffn.1} parent=0 // loop_footer
    %s15 = sadd.s32 1, %s11
  $region7: #{point_wise_ffn.1} parent=0 // loop_footer_branch
    %10 = sbr.rel target = $region3
  $region8: #{point_wise_ffn.1} parent=0 // loop_exit
    _

</llo_original>
